<compile_context>
chip_gen: v7x
topology: tpu7x:2x2x1
jax: 0.10.0
libtpu: 0.0.40
codegen_flags: <defaults>
</compile_context>

<pallas_src>
import math

import jax
import jax.numpy as jnp
from jax.experimental import pallas as pl
from jax.experimental.pallas import tpu as pltpu


def _broadcast_row_kernel(row_ref, out_ref):
    """Broadcast the resident (1, LANE) default row across a (TB, LANE) tile.

    Mirrors: self.default_hidden.expand(batch_size, 1, -1) (the length-1
    sequence axis is added by a metadata-only reshape outside the kernel).
    """
    out_ref[...] = jnp.broadcast_to(row_ref[...], out_ref.shape)


def _broadcast_default(default2d: jax.Array, batch_size: int) -> jax.Array:
    """Materialize (1, H) -> (batch_size, H) via a tiled, batch-parallel
    Pallas broadcast with a lane-dense output slab when possible."""
    h = default2d.shape[-1]
    dtype = default2d.dtype
    itemsize = jnp.dtype(dtype).itemsize

    # --- lane-density repack -------------------------------------------------
    # Fold k batch rows into one output row so the lane dim is a multiple of
    # 128 (dense, unmasked stores). k = 128 / gcd(H, 128) is the smallest fold.
    k = 128 // math.gcd(h, 128)
    if k > 1 and batch_size % k == 0:
        rows, lane = batch_size // k, k * h
        row = jnp.tile(default2d, (1, k))  # (1, k*H): tiny one-off setup op
    else:
        rows, lane = batch_size, h
        row = default2d

    row_bytes = lane * itemsize
    total_bytes = rows * row_bytes

    # --- batch-tile sizing -----------------------------------------------------
    # 8 MiB per output buffer => <=16 MiB double-buffered output + tiny resident
    # input, safely under v7x's 32 MiB scoped VMEM (and v5e/v6e's 128 MiB).
    per_buffer_budget = 8 * 1024 * 1024
    tb_cap = max(8, (per_buffer_budget // max(1, row_bytes)) // 8 * 8)

    if rows <= tb_cap:
        if total_bytes >= 4 * 1024 * 1024 and rows >= 32:
            # Large output that would otherwise be a single grid step: split
            # into ~4 steps so the "parallel" batch axis feeds both v7x cores.
            tb = min(tb_cap, max(8, ((-(-rows // 4)) + 7) // 8 * 8))
        else:
            tb = rows  # single full block (block dims == full array dims)
    else:
        tb = tb_cap

    grid = (pl.cdiv(rows, tb),)

    out2d = pl.pallas_call(
        _broadcast_row_kernel,
        out_shape=jax.ShapeDtypeStruct((rows, lane), dtype),
        grid_spec=pltpu.PrefetchScalarGridSpec(
            num_scalar_prefetch=0,
            grid=grid,
            # Constant index_map: parameter row DMA'd once, resident in VMEM.
            in_specs=[pl.BlockSpec((1, lane), lambda i: (0, 0))],
            # Output tiled over (folded) batch rows; double-buffered pipeline.
            out_specs=pl.BlockSpec((tb, lane), lambda i: (i, 0)),
        ),
        compiler_params=pltpu.CompilerParams(
            dimension_semantics=("parallel",),   # v7x: shard batch over 2 TCs
            vmem_limit_bytes=32 * 1024 * 1024,   # safe on v5e / v6e / v7x
        ),
    )(row)

    # (rows, k*H) and (batch_size, H) alias the same contiguous layout:
    # this reshape is metadata-only.
    return out2d.reshape(batch_size, h)


class SampleEncoderPallas:
    """JAX/Pallas port of the concrete parts of SampleEncoder."""

    def __init__(self, hidden_size: int, key: jax.Array, dtype=jnp.float32):
        self.hidden_size = hidden_size
        # nn.Parameter(torch.randn(1, 1, hidden_size)) -- deterministic init.
        # Use bf16 here if the consuming model runs in bf16 (halves HBM writes).
        self.default_hidden = jax.random.normal(
            key, (1, 1, hidden_size), dtype=dtype
        )

    def get_hidden_state(self, hidden_state, batch_size: int):
        if hidden_state is not None:
            # (B, H) -> (B, 1, H): metadata-only unsqueeze, no kernel needed.
            return hidden_state[:, None, :]

        # default_hidden: (1, 1, H) -> (B, H) via Pallas -> (B, 1, H) reshape.
        default2d = self.default_hidden.reshape(1, self.hidden_size)
        out2d = _broadcast_default(default2d, batch_size)
        return out2d.reshape(batch_size, 1, self.hidden_size)


if __name__ == "__main__":
    key = jax.random.PRNGKey(0)
    k_param, k_hidden = jax.random.split(key)

    hidden = 32
    enc = SampleEncoderPallas(hidden_size=hidden, key=k_param)

    # Path (a1): batch divisible by the lane-fold factor (k = 128/gcd(32,128) = 4)
    # -> lane-dense repacked kernel path (rows=2, lane=128).
    b1 = 8
    out1 = jax.block_until_ready(enc.get_hidden_state(None, batch_size=b1))
    assert out1.shape == (b1, 1, hidden)
    assert jnp.array_equal(
        out1, jnp.broadcast_to(enc.default_hidden, (b1, 1, hidden))
    )

    # Path (a2): batch NOT divisible by the fold factor -> fallback path
    # (block last dim equals the full array dim; correct, possibly masked).
    b2 = 2
    out2 = jax.block_until_ready(enc.get_hidden_state(None, batch_size=b2))
    assert out2.shape == (b2, 1, hidden)
    assert jnp.array_equal(
        out2, jnp.broadcast_to(enc.default_hidden, (b2, 1, hidden))
    )

    # Path (b): provided hidden_state -> metadata-only unsqueeze (no kernel).
    provided = jax.random.normal(k_hidden, (b2, hidden), dtype=jnp.float32)
    out3 = jax.block_until_ready(enc.get_hidden_state(provided, batch_size=b2))
    assert out3.shape == (b2, 1, hidden)
    assert jnp.array_equal(out3, provided[:, None, :])

    print("KERNEL_OK")
</pallas_src>

<mosaic_0001>
module attributes {stable_mosaic.version = 11 : i64} {
  func.func @_broadcast_row_kernel(%arg0: i32, %arg1: memref<1x128xf32, #tpu.memory_space<vmem>>, %arg2: memref<2x128xf32, #tpu.memory_space<vmem>>) attributes {dimension_semantics = [#tpu.dimension_semantics<parallel>], iteration_bounds = array<i64: 1>, scalar_prefetch = 0 : i64, scratch_operands = 0 : i64, tpu.core_type = #tpu.core_type<tc>, window_params = [{pipeline_mode = #tpu.pipeline_mode<synchronous>, transform_indices = @transform_0, window_bounds = array<i64: 1, 128>}, {transform_indices = @transform_1, window_bounds = array<i64: 2, 128>}]} {
    %c0 = arith.constant 0 : index
    %c0_0 = arith.constant 0 : index
    %0 = vector.load %arg1[%c0, %c0_0] : memref<1x128xf32, #tpu.memory_space<vmem>>, vector<1x128xf32>
    %1 = vector.shape_cast %0 : vector<1x128xf32> to vector<1x128xf32>
    %2 = vector.broadcast %1 : vector<1x128xf32> to vector<2x128xf32>
    %c0_1 = arith.constant 0 : index
    %c0_2 = arith.constant 0 : index
    %3 = vector.load %arg2[%c0_1, %c0_2] : memref<2x128xf32, #tpu.memory_space<vmem>>, vector<2x128xf32>
    tpu.vector_store %arg2[%c0_1, %c0_2], %2 {strides = array<i32>} : memref<2x128xf32, #tpu.memory_space<vmem>>, vector<2x128xf32>,
    return
  }
  func.func @transform_0(%arg0: i32) -> (i32, i32) {
    %c0_i32 = arith.constant 0 : i32
    %c0_i32_0 = arith.constant 0 : i32
    %c0_i32_1 = arith.constant 0 : i32
    return %c0_i32, %c0_i32_0 : i32, i32
  }
  func.func @transform_1(%arg0: i32) -> (i32, i32) {
    %c0_i32 = arith.constant 0 : i32
    %c0_i32_0 = arith.constant 0 : i32
    return %arg0, %c0_i32 : i32, i32
  }
}

</mosaic_0001>

<llo_original>
// kernel: tpu_custom_call.1
$region0: #{tpu_custom_call.1}
  #allocation0 [shape = 'u32[]', space=smem, size = 0x4, offset = 0x4, fixed_abs, tag = 'smem constant byte address 0x4 - core index']
  #allocation1 [shape = 'u32[144,128]{1,0:T(1,128)}', space=vmem, size = 0x12000, scoped, tag = 'internal scratch']
  %s0 = inlined_call_operand.hbm [shape: f32[1,128], index: 0, kind: input, shape index: {}]
  %s1 = inlined_call_operand.hbm [shape: f32[2,128], index: 1, kind: output, shape index: {}]
  %s2 = sld [smem:[#allocation0]]
  $region18: #{tpu_custom_call.1} parent=0
    _
  %s4 = ssub.s32 1, %s2
  %s5 = scalar_select 0, %s4, %s2
  $region1: #{tpu_custom_call.1} parent=0
    #allocation2 [shape = 'u8[512]{0}', space=vmem, size = 0x400, scoped, tag = 'input window, operand 0, single buffered']
    #allocation3 [shape = 's32[1]{0}', space=sflag, size = 0x4, scoped, tag = 'scoped memory for tpu_custom_call.1']
    #allocation4 [shape = 's32[1]{0}', space=sflag, size = 0x4, scoped, tag = 'scoped memory for tpu_custom_call.1']
    #allocation5 [shape = 'u8[1024]{0}', space=vmem, size = 0x400, scoped, tag = 'output window, operand 0, single buffered']
    %6 = vsyncpa [#allocation3], 0
    %7 = vsyncpa [#allocation4], 0
    // Predicated region
    $region2: #{tpu_custom_call.1} parent=1 // pred_check
      _
    $region3: #{tpu_custom_call.1} parent=1 // pred_check_branch
      %9 = sbr.rel (0) target = $region5
    $region4: #{tpu_custom_call.1} parent=1 // pred_region
      %s11 = ssub.s32 16, 16
      %12 = vsyncadd [#allocation3], %s11
      %s14 = sshll.u32 [#allocation2], 4
      %s15 = int_to_ptr.vmem [resolvable:$true] %s14
      %17 = dma.hbm_to_vmem [thread:$0]  %s0, 16, %s15, [#allocation3]
    $region5: #{tpu_custom_call.1} parent=1 // pred_fallthru
      _
    // Predicated region
    $region6: #{tpu_custom_call.1} parent=1 // pred_check
      _
    $region7: #{tpu_custom_call.1} parent=1 // pred_check_branch
      %19 = sbr.rel (0) target = $region9
    $region8: #{tpu_custom_call.1} parent=1 // pred_region
      %20 = dma.done [#allocation3], 16
    $region9: #{tpu_custom_call.1} parent=1 // pred_fallthru
      _
    %v21 = vld [vmem:[#allocation2] sm:$0x1]
    %v23 = vlaneseq
    %v24 = vshrl.u32 %v23, 7
    %v25 = vsub.s32 0, %v24
    %v26 = vrot.slane %v21, %v25
    %28 = vst [vmem:[#allocation5] sm:$0x3] %v26
    // Predicated region
    $region10: #{tpu_custom_call.1} parent=1 // pred_check
      _
    $region11: #{tpu_custom_call.1} parent=1 // pred_check_branch
      %30 = sbr.rel (0) target = $region13
    $region12: #{tpu_custom_call.1} parent=1 // pred_region
      %s32 = ssub.s32 32, 32
      %33 = vsyncadd [#allocation4], %s32
      %s35 = sshll.u32 [#allocation5], 4
      %s36 = int_to_ptr.vmem [resolvable:$true] %s35
      %38 = dma.vmem_to_hbm [thread:$0]  %s36, 32, %s1, [#allocation4]
    $region13: #{tpu_custom_call.1} parent=1 // pred_fallthru
      _
    // Predicated region
    $region14: #{tpu_custom_call.1} parent=1 // pred_check
      _
    $region15: #{tpu_custom_call.1} parent=1 // pred_check_branch
      %40 = sbr.rel (0) target = $region17
    $region16: #{tpu_custom_call.1} parent=1 // pred_region
      %41 = dma.done [#allocation4], 32
    $region17: #{tpu_custom_call.1} parent=1 // pred_fallthru
      _
    %42 = vsyncpa [#allocation3], 1
    %43 = vsyncpa [#allocation4], 1

</llo_original>
